<compile_context>
chip_gen: v6e
topology: v6e:2x2x1
jax: 0.10.0
libtpu: 0.0.40
codegen_flags: <defaults>
</compile_context>

<pallas_src>
import jax
import jax.numpy as jnp
from jax.experimental import pallas as pl
from jax.experimental.pallas import tpu as pltpu


def _fusion_kernel(ctx_ref, scores_ref,
                   w1_ref, b1_ref, w2_ref, b2_ref, w3_ref, b3_ref,
                   out_ref):
    # ctx_ref    : (nb, TN, two_h)   per-branch contexts (concat fused in-kernel)
    # scores_ref : (nb, TN, C)       per-branch class scores
    # w1_ref     : (nb, two_h, h1)   first Linear, split per branch
    # out_ref    : (TN, C)
    nb = ctx_ref.shape[0]

    # MATT layer 1: Linear(in_size -> h1) with the context-concat fused:
    #   concat(ctx_0..ctx_{nb-1}) @ W1  ==  sum_i ctx_i @ W1[i]
    acc1 = jnp.dot(ctx_ref[0], w1_ref[0], preferred_element_type=jnp.float32)
    for i in range(1, nb):                                   # nb static -> unrolled
        acc1 = acc1 + jnp.dot(ctx_ref[i], w1_ref[i],
                              preferred_element_type=jnp.float32)
    h1 = jnp.maximum(acc1 + b1_ref[...].astype(jnp.float32), 0.0)   # ReLU (Dropout = id)

    # MATT layer 2: Linear(h1 -> h2) + ReLU
    h2 = jnp.maximum(
        jnp.dot(h1, w2_ref[...], preferred_element_type=jnp.float32)
        + b2_ref[...].astype(jnp.float32), 0.0)

    # MATT layer 3: Linear(h2 -> nb)
    logits = (jnp.dot(h2, w3_ref[...], preferred_element_type=jnp.float32)
              + b3_ref[...].astype(jnp.float32))

    # softmax over the branch axis (dim=1), f32 throughout
    m = jnp.max(logits, axis=1, keepdims=True)
    e = jnp.exp(logits - m)
    a = e * pl.reciprocal(jnp.sum(e, axis=1, keepdims=True), approx=True)  # (TN, nb)

    # attention-weighted sum of branch scores (f32 accumulation)
    acc = scores_ref[0].astype(jnp.float32) * a[:, 0:1]
    for i in range(1, nb):
        acc = acc + scores_ref[i].astype(jnp.float32) * a[:, i:i + 1]
    out_ref[...] = acc.astype(out_ref.dtype)


def _choose_tile(N, tn):
    """Sublane-aligned (multiple of 8) token tile <= tn.  Keeps >= 2 grid steps
    when there is enough work and prefers an even step count so the 'parallel'
    axis splits evenly across v7x's two TensorCores."""
    tn = max(8, (tn // 8) * 8)
    steps = pl.cdiv(N, tn)
    if steps < 2:
        if N >= 16:
            steps = 2
    elif steps % 2 == 1:
        steps += 1
    return pl.cdiv(pl.cdiv(N, steps), 8) * 8


def _vmem_budget(nb, tn, two_h, C, h1, h2,
                 ctx_bytes, sc_bytes, w_bytes, out_bytes):
    """~2x the actual VMEM footprint (double-buffered I/O + resident weights +
    f32 intermediates), clamped well below v7x's 64 MiB physical VMEM."""
    lane = lambda d: pl.cdiv(d, 128) * 128
    ctx_blk = nb * tn * lane(two_h) * ctx_bytes
    sc_blk = nb * tn * lane(C) * sc_bytes
    out_blk = tn * lane(C) * out_bytes
    wts = (nb * two_h * lane(h1) + h1 * lane(h2) + h2 * lane(nb)
           + 3 * 8 * 128) * w_bytes
    inter = tn * (lane(h1) + lane(h2) + 2 * lane(nb) + lane(C)) * 4  # f32 temps
    need = 2 * (ctx_blk + sc_blk + out_blk) + 2 * wts + inter
    return int(max(16 << 20, min(2 * need, 48 << 20)))


def rulstm_fusion(scores, contexts, params, *, tn=1024):
    """scores   : (nb, B, S, C)        per-branch class scores
       contexts : (nb, B, S, 2*hidden) per-branch contexts
       params   : dict with MATT weights w1,b1,w2,b2,w3,b3
                  (w1 is (nb*2*hidden, h1), branch-major rows, torch.cat order)
       returns  : fused scores (B, S, C)"""
    nb, B, S, C = scores.shape
    two_h = contexts.shape[-1]
    N = B * S

    w1, b1 = params["w1"], params["b1"]
    w2, b2 = params["w2"], params["b2"]
    w3, b3 = params["w3"], params["b3"]
    h1, h2 = w1.shape[1], w2.shape[1]

    # split the first Linear per branch so the concat never materializes in HBM
    w1_split = w1.reshape(nb, two_h, h1)

    # tokens-major, no concat, no padding: (nb, N, feat)  (reshapes are free)
    scores_flat = scores.reshape(nb, N, C)
    ctx_flat = contexts.reshape(nb, N, two_h)

    tn_eff = _choose_tile(N, tn)
    # Ragged last block is handled by Pallas: OOB reads are row-local garbage
    # that only feeds rows whose writes are masked (every op is per-token).
    grid = (pl.cdiv(N, tn_eff),)

    vmem_limit = _vmem_budget(
        nb, tn_eff, two_h, C, h1, h2,
        ctx_flat.dtype.itemsize, scores_flat.dtype.itemsize,
        w1_split.dtype.itemsize, scores.dtype.itemsize)

    out = pl.pallas_call(
        _fusion_kernel,
        out_shape=jax.ShapeDtypeStruct((N, C), scores.dtype),
        grid_spec=pltpu.PrefetchScalarGridSpec(
            num_scalar_prefetch=0,
            grid=grid,
            in_specs=[
                pl.BlockSpec((nb, tn_eff, two_h), lambda i: (0, i, 0)),  # contexts
                pl.BlockSpec((nb, tn_eff, C), lambda i: (0, i, 0)),      # scores
                pl.BlockSpec((nb, two_h, h1), lambda i: (0, 0, 0)),      # w1 (resident)
                pl.BlockSpec((1, h1), lambda i: (0, 0)),                 # b1
                pl.BlockSpec((h1, h2), lambda i: (0, 0)),                # w2
                pl.BlockSpec((1, h2), lambda i: (0, 0)),                 # b2
                pl.BlockSpec((h2, nb), lambda i: (0, 0)),                # w3
                pl.BlockSpec((1, nb), lambda i: (0, 0)),                 # b3
            ],
            out_specs=pl.BlockSpec((tn_eff, C), lambda i: (i, 0)),       # lane-dense C last
        ),
        compiler_params=pltpu.CompilerParams(
            dimension_semantics=("parallel",),       # shards grid across v7x's 2 TCs
            vmem_limit_bytes=vmem_limit,
        ),
    )(ctx_flat, scores_flat, w1_split, b1, w2, b2, w3, b3)

    return out.reshape(B, S, C)


def _reference(scores, contexts, params):
    nb, B, S, C = scores.shape
    N = B * S
    ctx = jnp.concatenate([contexts[i].reshape(N, -1) for i in range(nb)], axis=-1)
    h1 = jnp.maximum(ctx @ params["w1"] + params["b1"], 0.0)
    h2 = jnp.maximum(h1 @ params["w2"] + params["b2"], 0.0)
    a = jax.nn.softmax(h2 @ params["w3"] + params["b3"], axis=1)
    sc = jnp.zeros((N, C), jnp.float32)
    for i in range(nb):
        sc = sc + scores[i].reshape(N, C) * a[:, i:i + 1]
    return sc.reshape(B, S, C)


if __name__ == "__main__":
    # small but representative shapes
    nb, B, S, hidden, C = 3, 2, 8, 32, 128
    two_h = 2 * hidden
    in_size = nb * two_h                 # 192
    h1, h2 = in_size // 4, in_size // 8  # 48, 24

    key = jax.random.PRNGKey(0)
    ks = jax.random.split(key, 8)
    scores = jax.random.normal(ks[0], (nb, B, S, C), jnp.float32)
    contexts = jax.random.normal(ks[1], (nb, B, S, two_h), jnp.float32)

    params = {
        "w1": 0.05 * jax.random.normal(ks[2], (in_size, h1), jnp.float32),
        "b1": 0.05 * jax.random.normal(ks[3], (1, h1), jnp.float32),
        "w2": 0.05 * jax.random.normal(ks[4], (h1, h2), jnp.float32),
        "b2": 0.05 * jax.random.normal(ks[5], (1, h2), jnp.float32),
        "w3": 0.05 * jax.random.normal(ks[6], (h2, nb), jnp.float32),
        "b3": 0.05 * jax.random.normal(ks[7], (1, nb), jnp.float32),
    }

    # main check (f32 I/O; approx reciprocal in softmax -> ~1e-3-level tolerance)
    out = jax.block_until_ready(rulstm_fusion(scores, contexts, params))
    ref = _reference(scores, contexts, params)
    assert out.shape == (B, S, C)
    assert jnp.allclose(out, ref, atol=5e-3, rtol=5e-3), "mismatch vs reference"

    # ragged token count (N = 10, not a multiple of the tile or of 8):
    # exercises the Pallas partial-block path (no wrapper pad / slice).
    S2 = 5
    scores2 = jax.random.normal(ks[0], (nb, B, S2, C), jnp.float32)
    contexts2 = jax.random.normal(ks[1], (nb, B, S2, two_h), jnp.float32)
    out2 = jax.block_until_ready(rulstm_fusion(scores2, contexts2, params))
    ref2 = _reference(scores2, contexts2, params)
    assert out2.shape == (B, S2, C)
    assert jnp.allclose(out2, ref2, atol=5e-3, rtol=5e-3), "mismatch (ragged N)"

    # bf16 I/O path (memory-bound kernel -> ~2x less HBM traffic); accumulation
    # and softmax stay f32 inside the kernel, so only input rounding + output
    # cast differ from the f32-upcast reference.
    to_bf16 = lambda t: jax.tree_util.tree_map(
        lambda x: x.astype(jnp.bfloat16), t)
    to_f32 = lambda t: jax.tree_util.tree_map(
        lambda x: x.astype(jnp.float32), t)
    scores_bf, contexts_bf, params_bf = to_bf16(scores), to_bf16(contexts), to_bf16(params)
    out_bf = jax.block_until_ready(rulstm_fusion(scores_bf, contexts_bf, params_bf))
    ref_bf = _reference(to_f32(scores_bf), to_f32(contexts_bf), to_f32(params_bf))
    assert out_bf.dtype == jnp.bfloat16
    assert jnp.allclose(out_bf.astype(jnp.float32), ref_bf, atol=3e-2, rtol=3e-2), \
        "mismatch (bf16 I/O)"

    print("KERNEL_OK")
</pallas_src>

<mosaic_0001>
module attributes {stable_mosaic.version = 11 : i64} {
  func.func @_fusion_kernel(%arg0: i32, %arg1: memref<3x8x64xf32, #tpu.memory_space<vmem>>, %arg2: memref<3x8x128xf32, #tpu.memory_space<vmem>>, %arg3: memref<3x64x48xf32, #tpu.memory_space<vmem>>, %arg4: memref<1x48xf32, #tpu.memory_space<vmem>>, %arg5: memref<48x24xf32, #tpu.memory_space<vmem>>, %arg6: memref<1x24xf32, #tpu.memory_space<vmem>>, %arg7: memref<24x3xf32, #tpu.memory_space<vmem>>, %arg8: memref<1x3xf32, #tpu.memory_space<vmem>>, %arg9: memref<8x128xf32, #tpu.memory_space<vmem>>) attributes {dimension_semantics = [#tpu.dimension_semantics<parallel>], iteration_bounds = array<i64: 2>, scalar_prefetch = 0 : i64, scratch_operands = 0 : i64, tpu.core_type = #tpu.core_type<tc>, window_params = [{transform_indices = @transform_0, window_bounds = array<i64: 3, 8, 64>}, {transform_indices = @transform_1, window_bounds = array<i64: 3, 8, 128>}, {pipeline_mode = #tpu.pipeline_mode<synchronous>, transform_indices = @transform_2, window_bounds = array<i64: 3, 64, 48>}, {pipeline_mode = #tpu.pipeline_mode<synchronous>, transform_indices = @transform_3, window_bounds = array<i64: 1, 48>}, {pipeline_mode = #tpu.pipeline_mode<synchronous>, transform_indices = @transform_4, window_bounds = array<i64: 48, 24>}, {pipeline_mode = #tpu.pipeline_mode<synchronous>, transform_indices = @transform_5, window_bounds = array<i64: 1, 24>}, {pipeline_mode = #tpu.pipeline_mode<synchronous>, transform_indices = @transform_6, window_bounds = array<i64: 24, 3>}, {pipeline_mode = #tpu.pipeline_mode<synchronous>, transform_indices = @transform_7, window_bounds = array<i64: 1, 3>}, {transform_indices = @transform_8, window_bounds = array<i64: 8, 128>}]} {
    %c0 = arith.constant 0 : index
    %c0_0 = arith.constant 0 : index
    %c0_1 = arith.constant 0 : index
    %0 = vector.load %arg1[%c0, %c0_0, %c0_1] : memref<3x8x64xf32, #tpu.memory_space<vmem>>, vector<1x8x64xf32>
    %1 = vector.shape_cast %0 : vector<1x8x64xf32> to vector<8x64xf32>
    %c0_2 = arith.constant 0 : index
    %c0_3 = arith.constant 0 : index
    %c0_4 = arith.constant 0 : index
    %2 = vector.load %arg3[%c0_2, %c0_3, %c0_4] : memref<3x64x48xf32, #tpu.memory_space<vmem>>, vector<1x64x48xf32>
    %3 = vector.shape_cast %2 : vector<1x64x48xf32> to vector<64x48xf32>
    %cst = arith.constant dense<0.000000e+00> : vector<8x48xf32>
    %4 = tpu.matmul %1, %3, %cst {dimension_numbers = #tpu.dot_dimension_numbers<[1], [0], [0], [1], [0, 0, 1, 1], [], []>} : vector<8x64xf32>, vector<64x48xf32>, vector<8x48xf32> -> vector<8x48xf32>
    %c1 = arith.constant 1 : index
    %c0_5 = arith.constant 0 : index
    %c0_6 = arith.constant 0 : index
    %5 = vector.load %arg1[%c1, %c0_5, %c0_6] : memref<3x8x64xf32, #tpu.memory_space<vmem>>, vector<1x8x64xf32>
    %6 = vector.shape_cast %5 : vector<1x8x64xf32> to vector<8x64xf32>
    %c1_7 = arith.constant 1 : index
    %c0_8 = arith.constant 0 : index
    %c0_9 = arith.constant 0 : index
    %7 = vector.load %arg3[%c1_7, %c0_8, %c0_9] : memref<3x64x48xf32, #tpu.memory_space<vmem>>, vector<1x64x48xf32>
    %8 = vector.shape_cast %7 : vector<1x64x48xf32> to vector<64x48xf32>
    %cst_10 = arith.constant dense<0.000000e+00> : vector<8x48xf32>
    %9 = tpu.matmul %6, %8, %cst_10 {dimension_numbers = #tpu.dot_dimension_numbers<[1], [0], [0], [1], [0, 0, 1, 1], [], []>} : vector<8x64xf32>, vector<64x48xf32>, vector<8x48xf32> -> vector<8x48xf32>
    %10 = arith.addf %4, %9 : vector<8x48xf32>
    %c2 = arith.constant 2 : index
    %c0_11 = arith.constant 0 : index
    %c0_12 = arith.constant 0 : index
    %11 = vector.load %arg1[%c2, %c0_11, %c0_12] : memref<3x8x64xf32, #tpu.memory_space<vmem>>, vector<1x8x64xf32>
    %12 = vector.shape_cast %11 : vector<1x8x64xf32> to vector<8x64xf32>
    %c2_13 = arith.constant 2 : index
    %c0_14 = arith.constant 0 : index
    %c0_15 = arith.constant 0 : index
    %13 = vector.load %arg3[%c2_13, %c0_14, %c0_15] : memref<3x64x48xf32, #tpu.memory_space<vmem>>, vector<1x64x48xf32>
    %14 = vector.shape_cast %13 : vector<1x64x48xf32> to vector<64x48xf32>
    %cst_16 = arith.constant dense<0.000000e+00> : vector<8x48xf32>
    %15 = tpu.matmul %12, %14, %cst_16 {dimension_numbers = #tpu.dot_dimension_numbers<[1], [0], [0], [1], [0, 0, 1, 1], [], []>} : vector<8x64xf32>, vector<64x48xf32>, vector<8x48xf32> -> vector<8x48xf32>
    %16 = arith.addf %10, %15 : vector<8x48xf32>
    %c0_17 = arith.constant 0 : index
    %c0_18 = arith.constant 0 : index
    %17 = vector.load %arg4[%c0_17, %c0_18] : memref<1x48xf32, #tpu.memory_space<vmem>>, vector<1x48xf32>
    %18 = vector.broadcast %17 : vector<1x48xf32> to vector<8x48xf32>
    %19 = arith.addf %16, %18 : vector<8x48xf32>
    %cst_19 = arith.constant 0.000000e+00 : f32
    %20 = vector.broadcast %cst_19 : f32 to vector<8x48xf32>
    %21 = arith.maximumf %19, %20 : vector<8x48xf32>
    %c0_20 = arith.constant 0 : index
    %c0_21 = arith.constant 0 : index
    %22 = vector.load %arg5[%c0_20, %c0_21] : memref<48x24xf32, #tpu.memory_space<vmem>>, vector<48x24xf32>
    %cst_22 = arith.constant dense<0.000000e+00> : vector<8x24xf32>
    %23 = tpu.matmul %21, %22, %cst_22 {dimension_numbers = #tpu.dot_dimension_numbers<[1], [0], [0], [1], [0, 0, 1, 1], [], []>} : vector<8x48xf32>, vector<48x24xf32>, vector<8x24xf32> -> vector<8x24xf32>
    %c0_23 = arith.constant 0 : index
    %c0_24 = arith.constant 0 : index
    %24 = vector.load %arg6[%c0_23, %c0_24] : memref<1x24xf32, #tpu.memory_space<vmem>>, vector<1x24xf32>
    %25 = vector.broadcast %24 : vector<1x24xf32> to vector<8x24xf32>
    %26 = arith.addf %23, %25 : vector<8x24xf32>
    %cst_25 = arith.constant 0.000000e+00 : f32
    %27 = vector.broadcast %cst_25 : f32 to vector<8x24xf32>
    %28 = arith.maximumf %26, %27 : vector<8x24xf32>
    %c0_26 = arith.constant 0 : index
    %c0_27 = arith.constant 0 : index
    %29 = vector.load %arg7[%c0_26, %c0_27] : memref<24x3xf32, #tpu.memory_space<vmem>>, vector<24x3xf32>
    %cst_28 = arith.constant dense<0.000000e+00> : vector<8x3xf32>
    %30 = tpu.matmul %28, %29, %cst_28 {dimension_numbers = #tpu.dot_dimension_numbers<[1], [0], [0], [1], [0, 0, 1, 1], [], []>} : vector<8x24xf32>, vector<24x3xf32>, vector<8x3xf32> -> vector<8x3xf32>
    %c0_29 = arith.constant 0 : index
    %c0_30 = arith.constant 0 : index
    %31 = vector.load %arg8[%c0_29, %c0_30] : memref<1x3xf32, #tpu.memory_space<vmem>>, vector<1x3xf32>
    %32 = vector.broadcast %31 : vector<1x3xf32> to vector<8x3xf32>
    %33 = arith.addf %30, %32 : vector<8x3xf32>
    %cst_31 = arith.constant dense<0xFF800000> : vector<8xf32>
    %34 = vector.multi_reduction <maximumf>, %33, %cst_31 [1] : vector<8x3xf32> to vector<8xf32>
    %35 = vector.shape_cast %34 : vector<8xf32> to vector<8x1xf32>
    %36 = vector.broadcast %35 : vector<8x1xf32> to vector<8x3xf32>
    %37 = arith.subf %33, %36 : vector<8x3xf32>
    %38 = math.exp %37 : vector<8x3xf32>
    %cst_32 = arith.constant dense<0.000000e+00> : vector<8xf32>
    %39 = vector.multi_reduction <add>, %38, %cst_32 [1] : vector<8x3xf32> to vector<8xf32>
    %40 = vector.shape_cast %39 : vector<8xf32> to vector<8x1xf32>
    %41 = tpu.reciprocal %40 {approx = true} : vector<8x1xf32> -> vector<8x1xf32>
    %42 = vector.broadcast %41 : vector<8x1xf32> to vector<8x3xf32>
    %43 = arith.mulf %38, %42 : vector<8x3xf32>
    %c0_33 = arith.constant 0 : index
    %c0_34 = arith.constant 0 : index
    %c0_35 = arith.constant 0 : index
    %44 = vector.load %arg2[%c0_33, %c0_34, %c0_35] : memref<3x8x128xf32, #tpu.memory_space<vmem>>, vector<1x8x128xf32>
    %45 = vector.shape_cast %44 : vector<1x8x128xf32> to vector<8x128xf32>
    %46 = vector.extract_strided_slice %43 {offsets = [0, 0], sizes = [8, 1], strides = [1, 1]} : vector<8x3xf32> to vector<8x1xf32>
    %47 = vector.broadcast %46 : vector<8x1xf32> to vector<8x128xf32>
    %48 = arith.mulf %45, %47 : vector<8x128xf32>
    %c1_36 = arith.constant 1 : index
    %c0_37 = arith.constant 0 : index
    %c0_38 = arith.constant 0 : index
    %49 = vector.load %arg2[%c1_36, %c0_37, %c0_38] : memref<3x8x128xf32, #tpu.memory_space<vmem>>, vector<1x8x128xf32>
    %50 = vector.shape_cast %49 : vector<1x8x128xf32> to vector<8x128xf32>
    %51 = vector.extract_strided_slice %43 {offsets = [0, 1], sizes = [8, 1], strides = [1, 1]} : vector<8x3xf32> to vector<8x1xf32>
    %52 = vector.broadcast %51 : vector<8x1xf32> to vector<8x128xf32>
    %53 = arith.mulf %50, %52 : vector<8x128xf32>
    %54 = arith.addf %48, %53 : vector<8x128xf32>
    %c2_39 = arith.constant 2 : index
    %c0_40 = arith.constant 0 : index
    %c0_41 = arith.constant 0 : index
    %55 = vector.load %arg2[%c2_39, %c0_40, %c0_41] : memref<3x8x128xf32, #tpu.memory_space<vmem>>, vector<1x8x128xf32>
    %56 = vector.shape_cast %55 : vector<1x8x128xf32> to vector<8x128xf32>
    %57 = vector.extract_strided_slice %43 {offsets = [0, 2], sizes = [8, 1], strides = [1, 1]} : vector<8x3xf32> to vector<8x1xf32>
    %58 = vector.broadcast %57 : vector<8x1xf32> to vector<8x128xf32>
    %59 = arith.mulf %56, %58 : vector<8x128xf32>
    %60 = arith.addf %54, %59 : vector<8x128xf32>
    %c0_42 = arith.constant 0 : index
    %c0_43 = arith.constant 0 : index
    %61 = vector.load %arg9[%c0_42, %c0_43] : memref<8x128xf32, #tpu.memory_space<vmem>>, vector<8x128xf32>
    tpu.vector_store %arg9[%c0_42, %c0_43], %60 {strides = array<i32>} : memref<8x128xf32, #tpu.memory_space<vmem>>, vector<8x128xf32>,
    return
  }
  func.func @transform_0(%arg0: i32) -> (i32, i32, i32) {
    %c0_i32 = arith.constant 0 : i32
    %c0_i32_0 = arith.constant 0 : i32
    %c0_i32_1 = arith.constant 0 : i32
    return %c0_i32, %arg0, %c0_i32_0 : i32, i32, i32
  }
  func.func @transform_1(%arg0: i32) -> (i32, i32, i32) {
    %c0_i32 = arith.constant 0 : i32
    %c0_i32_0 = arith.constant 0 : i32
    %c0_i32_1 = arith.constant 0 : i32
    return %c0_i32, %arg0, %c0_i32_0 : i32, i32, i32
  }
  func.func @transform_2(%arg0: i32) -> (i32, i32, i32) {
    %c0_i32 = arith.constant 0 : i32
    %c0_i32_0 = arith.constant 0 : i32
    %c0_i32_1 = arith.constant 0 : i32
    %c0_i32_2 = arith.constant 0 : i32
    return %c0_i32, %c0_i32_0, %c0_i32_1 : i32, i32, i32
  }
  func.func @transform_3(%arg0: i32) -> (i32, i32) {
    %c0_i32 = arith.constant 0 : i32
    %c0_i32_0 = arith.constant 0 : i32
    %c0_i32_1 = arith.constant 0 : i32
    return %c0_i32, %c0_i32_0 : i32, i32
  }
  func.func @transform_4(%arg0: i32) -> (i32, i32) {
    %c0_i32 = arith.constant 0 : i32
    %c0_i32_0 = arith.constant 0 : i32
    %c0_i32_1 = arith.constant 0 : i32
    return %c0_i32, %c0_i32_0 : i32, i32
  }
  func.func @transform_5(%arg0: i32) -> (i32, i32) {
    %c0_i32 = arith.constant 0 : i32
    %c0_i32_0 = arith.constant 0 : i32
    %c0_i32_1 = arith.constant 0 : i32
    return %c0_i32, %c0_i32_0 : i32, i32
  }
  func.func @transform_6(%arg0: i32) -> (i32, i32) {
    %c0_i32 = arith.constant 0 : i32
    %c0_i32_0 = arith.constant 0 : i32
    %c0_i32_1 = arith.constant 0 : i32
    return %c0_i32, %c0_i32_0 : i32, i32
  }
  func.func @transform_7(%arg0: i32) -> (i32, i32) {
    %c0_i32 = arith.constant 0 : i32
    %c0_i32_0 = arith.constant 0 : i32
    %c0_i32_1 = arith.constant 0 : i32
    return %c0_i32, %c0_i32_0 : i32, i32
  }
  func.func @transform_8(%arg0: i32) -> (i32, i32) {
    %c0_i32 = arith.constant 0 : i32
    %c0_i32_0 = arith.constant 0 : i32
    return %arg0, %c0_i32 : i32, i32
  }
}

</mosaic_0001>

<llo_original>
// kernel: tpu_custom_call.1
$region0: #{tpu_custom_call.1}
  #allocation0 [shape = 'u32[]', space=smem, size = 0x4, offset = 0x4, fixed_abs, tag = 'smem constant byte address 0x4 - core index']
  #allocation1 [shape = 'u32[144,128]{1,0:T(1,128)}', space=vmem, size = 0x12000, scoped, tag = 'internal scratch']
  %s0 = inlined_call_operand.vmem [shape: f32[3,16,64], index: 0, kind: input, shape index: {}]
  %s1 = inlined_call_operand.vmem [shape: f32[3,16,128], index: 1, kind: input, shape index: {}]
  %s2 = inlined_call_operand.vmem [shape: f32[3,64,48], index: 2, kind: input, shape index: {}]
  %s3 = inlined_call_operand.vmem [shape: f32[1,48], index: 3, kind: input, shape index: {}]
  %s4 = inlined_call_operand.vmem [shape: f32[48,24], index: 4, kind: input, shape index: {}]
  %s5 = inlined_call_operand.vmem [shape: f32[1,24], index: 5, kind: input, shape index: {}]
  %s6 = inlined_call_operand.vmem [shape: f32[24,3], index: 6, kind: input, shape index: {}]
  %s7 = inlined_call_operand.vmem [shape: f32[1,3], index: 7, kind: input, shape index: {}]
  %s8 = inlined_call_operand.hbm [shape: f32[16,128], index: 8, kind: output, shape index: {}]
  %s9 = sld [smem:[#allocation0]]
  $region141: #{tpu_custom_call.1} parent=0
    _
  %s11 = ssub.s32 1, %s9
  %s12 = scalar_select 0, %s11, %s9
  $region1: #{tpu_custom_call.1} parent=0
    #allocation2 [shape = 'u8[24576]{0}', space=vmem, size = 0x6000, scoped, tag = 'input window, operand 0']
    #allocation3 [shape = 'u8[24576]{0}', space=vmem, size = 0x6000, scoped, tag = 'input window, operand 1']
    #allocation4 [shape = 'u8[8192]{0}', space=vmem, size = 0x2000, scoped, tag = 'output window, operand 0']
    #allocation5 [shape = 's32[2]{0}', space=sflag, size = 0x8, scoped, tag = 'scoped memory for tpu_custom_call.1']
    %13 = vsyncpa [#allocation5], 0
    %s14 = scalar_lea.sflag [#allocation5], 1
    %15 = vsyncpa %s14, 0
    loop: start=0, step=1, limit=4
    $region2: #{tpu_custom_call.1} parent=1 // loop_pre_header
      _
    $region3: #{tpu_custom_call.1} parent=1 // loop_header
      %s17 = sphi 0, %s21
      %p18 = scmp.ge.s32.totalorder %s17, 4
      %s27 = sphi 0, %s29
      %s30 = sphi 0, %s27
      %s31 = sphi 0, %s30
      %s47 = sphi 0, %s31
      %s53 = sphi 0, %s55
      %s56 = sphi 0, %s53
      %s57 = sphi 0, %s56
      %s73 = sphi 0, %s57
      %s77 = sphi 0, %s77
      %s79 = sphi 0, %s77
      %s80 = sphi 0, %s79
      %s94 = sphi 0, %s80
      %s98 = sphi 0, %s98
      %s100 = sphi 0, %s98
      %s101 = sphi 0, %s100
      %s115 = sphi 0, %s101
      %s119 = sphi 0, %s119
      %s121 = sphi 0, %s119
      %s122 = sphi 0, %s121
      %s136 = sphi 0, %s122
      %s140 = sphi 0, %s140
      %s142 = sphi 0, %s140
      %s143 = sphi 0, %s142
      %s157 = sphi 0, %s143
      %s161 = sphi 0, %s161
      %s163 = sphi 0, %s161
      %s164 = sphi 0, %s163
      %s178 = sphi 0, %s164
      %s182 = sphi 0, %s182
      %s184 = sphi 0, %s182
      %s185 = sphi 0, %s184
      %s199 = sphi 0, %s185
      %s205 = sphi 0, %s207
      %s208 = sphi 0, %s205
      %s209 = sphi 0, %s208
      %s225 = sphi 0, %s209
    $region4: #{tpu_custom_call.1} parent=1 // loop_header_branch
      %20 = sbr.rel (%p18) target = $region8
    $region5: #{tpu_custom_call.1} parent=1 // loop_body
      %s22 = ssub.s32 %s17, 1
      %s23 = ssub.s32 %s17, 2
      %s24 = sadd.s32 %s17, 1
      %s25 = ssub.s32 %s17, %s24
      %p26 = scmp.eq.s32.totalorder %s25, 0
      %s28 = sadd.s32 %s27, 1
      %s29 = scalar_select %p26, %s27, %s28
      %p32 = pneg %p26
      %p33 = scmp.eq.s32.totalorder %s17, 1
      %p34 = por %p32, %p33
      %p35 = scmp.ne.s32.totalorder %s27, %s30
      %p36 = scmp.eq.s32.totalorder %s17, 0
      %p37 = por %p35, %p36
      %p38 = scmp.ne.s32.totalorder %s27, %s30
      %p39 = scmp.eq.s32.totalorder %s22, 1
      %p40 = por %p38, %p39
      %p41 = scmp.ne.s32.totalorder %s30, %s31
      %p42 = scmp.eq.s32.totalorder %s22, 0
      %p43 = por %p41, %p42
      %p44 = scmp.ne.s32.totalorder %s30, %s31
      %p45 = scmp.eq.s32.totalorder %s23, 1
      %p46 = por %p44, %p45
      %p48 = scmp.ne.s32.totalorder %s31, %s47
      %p49 = scmp.eq.s32.totalorder %s23, 0
      %p50 = por %p48, %p49
      %s51 = ssub.s32 %s17, %s24
      %p52 = scmp.eq.s32.totalorder %s51, 0
      %s54 = sadd.s32 %s53, 1
      %s55 = scalar_select %p52, %s53, %s54
      %p58 = pneg %p52
      %p59 = scmp.eq.s32.totalorder %s17, 1
      %p60 = por %p58, %p59
      %p61 = scmp.ne.s32.totalorder %s53, %s56
      %p62 = scmp.eq.s32.totalorder %s17, 0
      %p63 = por %p61, %p62
      %p64 = scmp.ne.s32.totalorder %s53, %s56
      %p65 = scmp.eq.s32.totalorder %s22, 1
      %p66 = por %p64, %p65
      %p67 = scmp.ne.s32.totalorder %s56, %s57
      %p68 = scmp.eq.s32.totalorder %s22, 0
      %p69 = por %p67, %p68
      %p70 = scmp.ne.s32.totalorder %s56, %s57
      %p71 = scmp.eq.s32.totalorder %s23, 1
      %p72 = por %p70, %p71
      %p74 = scmp.ne.s32.totalorder %s57, %s73
      %p75 = scmp.eq.s32.totalorder %s23, 0
      %p76 = por %p74, %p75
      %s78 = sadd.s32 %s77, 1
      %p81 = scmp.eq.s32.totalorder %s17, 1
      %p82 = scmp.ne.s32.totalorder %s77, %s79
      %p83 = scmp.eq.s32.totalorder %s17, 0
      %p84 = por %p82, %p83
      %p85 = scmp.ne.s32.totalorder %s77, %s79
      %p86 = scmp.eq.s32.totalorder %s22, 1
      %p87 = por %p85, %p86
      %p88 = scmp.ne.s32.totalorder %s79, %s80
      %p89 = scmp.eq.s32.totalorder %s22, 0
      %p90 = por %p88, %p89
      %p91 = scmp.ne.s32.totalorder %s79, %s80
      %p92 = scmp.eq.s32.totalorder %s23, 1
      %p93 = por %p91, %p92
      %p95 = scmp.ne.s32.totalorder %s80, %s94
      %p96 = scmp.eq.s32.totalorder %s23, 0
      %p97 = por %p95, %p96
      %s99 = sadd.s32 %s98, 1
      %p102 = scmp.eq.s32.totalorder %s17, 1
      %p103 = scmp.ne.s32.totalorder %s98, %s100
      %p104 = scmp.eq.s32.totalorder %s17, 0
      %p105 = por %p103, %p104
      %p106 = scmp.ne.s32.totalorder %s98, %s100
      %p107 = scmp.eq.s32.totalorder %s22, 1
      %p108 = por %p106, %p107
      %p109 = scmp.ne.s32.totalorder %s100, %s101
      %p110 = scmp.eq.s32.totalorder %s22, 0
      %p111 = por %p109, %p110
      %p112 = scmp.ne.s32.totalorder %s100, %s101
      %p113 = scmp.eq.s32.totalorder %s23, 1
      %p114 = por %p112, %p113
      %p116 = scmp.ne.s32.totalorder %s101, %s115
      %p117 = scmp.eq.s32.totalorder %s23, 0
      %p118 = por %p116, %p117
      %s120 = sadd.s32 %s119, 1
      %p123 = scmp.eq.s32.totalorder %s17, 1
      %p124 = scmp.ne.s32.totalorder %s119, %s121
      %p125 = scmp.eq.s32.totalorder %s17, 0
      %p126 = por %p124, %p125
      %p127 = scmp.ne.s32.totalorder %s119, %s121
      %p128 = scmp.eq.s32.totalorder %s22, 1
      %p129 = por %p127, %p128
      %p130 = scmp.ne.s32.totalorder %s121, %s122
      %p131 = scmp.eq.s32.totalorder %s22, 0
      %p132 = por %p130, %p131
      %p133 = scmp.ne.s32.totalorder %s121, %s122
      %p134 = scmp.eq.s32.totalorder %s23, 1
      %p135 = por %p133, %p134
      %p137 = scmp.ne.s32.totalorder %s122, %s136
      %p138 = scmp.eq.s32.totalorder %s23, 0
      %p139 = por %p137, %p138
      %s141 = sadd.s32 %s140, 1
      %p144 = scmp.eq.s32.totalorder %s17, 1
      %p145 = scmp.ne.s32.totalorder %s140, %s142
      %p146 = scmp.eq.s32.totalorder %s17, 0
      %p147 = por %p145, %p146
      %p148 = scmp.ne.s32.totalorder %s140, %s142
      %p149 = scmp.eq.s32.totalorder %s22, 1
      %p150 = por %p148, %p149
      %p151 = scmp.ne.s32.totalorder %s142, %s143
      %p152 = scmp.eq.s32.totalorder %s22, 0
      %p153 = por %p151, %p152
      %p154 = scmp.ne.s32.totalorder %s142, %s143
      %p155 = scmp.eq.s32.totalorder %s23, 1
      %p156 = por %p154, %p155
      %p158 = scmp.ne.s32.totalorder %s143, %s157
      %p159 = scmp.eq.s32.totalorder %s23, 0
      %p160 = por %p158, %p159
      %s162 = sadd.s32 %s161, 1
      %p165 = scmp.eq.s32.totalorder %s17, 1
      %p166 = scmp.ne.s32.totalorder %s161, %s163
      %p167 = scmp.eq.s32.totalorder %s17, 0
      %p168 = por %p166, %p167
      %p169 = scmp.ne.s32.totalorder %s161, %s163
      %p170 = scmp.eq.s32.totalorder %s22, 1
      %p171 = por %p169, %p170
      %p172 = scmp.ne.s32.totalorder %s163, %s164
      %p173 = scmp.eq.s32.totalorder %s22, 0
      %p174 = por %p172, %p173
      %p175 = scmp.ne.s32.totalorder %s163, %s164
      %p176 = scmp.eq.s32.totalorder %s23, 1
      %p177 = por %p175, %p176
      %p179 = scmp.ne.s32.totalorder %s164, %s178
      %p180 = scmp.eq.s32.totalorder %s23, 0
      %p181 = por %p179, %p180
      %s183 = sadd.s32 %s182, 1
      %p186 = scmp.eq.s32.totalorder %s17, 1
      %p187 = scmp.ne.s32.totalorder %s182, %s184
      %p188 = scmp.eq.s32.totalorder %s17, 0
      %p189 = por %p187, %p188
      %p190 = scmp.ne.s32.totalorder %s182, %s184
      %p191 = scmp.eq.s32.totalorder %s22, 1
      %p192 = por %p190, %p191
      %p193 = scmp.ne.s32.totalorder %s184, %s185
      %p194 = scmp.eq.s32.totalorder %s22, 0
      %p195 = por %p193, %p194
      %p196 = scmp.ne.s32.totalorder %s184, %s185
      %p197 = scmp.eq.s32.totalorder %s23, 1
      %p198 = por %p196, %p197
      %p200 = scmp.ne.s32.totalorder %s185, %s199
      %p201 = scmp.eq.s32.totalorder %s23, 0
      %p202 = por %p200, %p201
      %s203 = ssub.s32 %s17, %s24
      %p204 = scmp.eq.s32.totalorder %s203, 0
      %s206 = sadd.s32 %s205, 1
      %s207 = scalar_select %p204, %s205, %s206
      %p210 = pneg %p204
      %p211 = scmp.eq.s32.totalorder %s17, 1
      %p212 = por %p210, %p211
      %p213 = scmp.ne.s32.totalorder %s205, %s208
      %p214 = scmp.eq.s32.totalorder %s17, 0
      %p215 = por %p213, %p214
      %p216 = scmp.ne.s32.totalorder %s205, %s208
      %p217 = scmp.eq.s32.totalorder %s22, 1
      %p218 = por %p216, %p217
      %p219 = scmp.ne.s32.totalorder %s208, %s209
      %p220 = scmp.eq.s32.totalorder %s22, 0
      %p221 = por %p219, %p220
      %p222 = scmp.ne.s32.totalorder %s208, %s209
      %p223 = scmp.eq.s32.totalorder %s23, 1
      %p224 = por %p222, %p223
      %p226 = scmp.ne.s32.totalorder %s209, %s225
      %p227 = scmp.eq.s32.totalorder %s23, 0
      %p228 = por %p226, %p227
      %p229 = scmp.le.s32.totalorder 1, %s17
      %p230 = scmp.lt.s32.totalorder %s17, 3
      %p231 = pnand %p229, %p230
      %p232 = pneg %p231
      // Predicated region
      $region9: #{tpu_custom_call.1} parent=5 // pred_check
        _
      $region10: #{tpu_custom_call.1} parent=5 // pred_check_branch
        %234 = sbr.rel (%p231) target = $region12
      $region11: #{tpu_custom_call.1} parent=5 // pred_region
        %s235 = ssub.s32 %s17, 1
        // Predicated region
        $region13: #{tpu_custom_call.1} parent=11 // pred_check
          %p236 = pneg %p90
        $region14: #{tpu_custom_call.1} parent=11 // pred_check_branch
          %238 = sbr.rel (%p236) target = $region16
        $region15: #{tpu_custom_call.1} parent=11 // pred_region
          _
        $region16: #{tpu_custom_call.1} parent=11 // pred_fallthru
          _
        // Predicated region
        $region17: #{tpu_custom_call.1} parent=11 // pred_check
          %p239 = pneg %p111
        $region18: #{tpu_custom_call.1} parent=11 // pred_check_branch
          %241 = sbr.rel (%p239) target = $region20
        $region19: #{tpu_custom_call.1} parent=11 // pred_region
          _
        $region20: #{tpu_custom_call.1} parent=11 // pred_fallthru
          _
        // Predicated region
        $region21: #{tpu_custom_call.1} parent=11 // pred_check
          %p242 = pneg %p132
        $region22: #{tpu_custom_call.1} parent=11 // pred_check_branch
          %244 = sbr.rel (%p242) target = $region24
        $region23: #{tpu_custom_call.1} parent=11 // pred_region
          _
        $region24: #{tpu_custom_call.1} parent=11 // pred_fallthru
          _
        // Predicated region
        $region25: #{tpu_custom_call.1} parent=11 // pred_check
          %p245 = pneg %p153
        $region26: #{tpu_custom_call.1} parent=11 // pred_check_branch
          %247 = sbr.rel (%p245) target = $region28
        $region27: #{tpu_custom_call.1} parent=11 // pred_region
          _
        $region28: #{tpu_custom_call.1} parent=11 // pred_fallthru
          _
        // Predicated region
        $region29: #{tpu_custom_call.1} parent=11 // pred_check
          %p248 = pneg %p174
        $region30: #{tpu_custom_call.1} parent=11 // pred_check_branch
          %250 = sbr.rel (%p248) target = $region32
        $region31: #{tpu_custom_call.1} parent=11 // pred_region
          _
        $region32: #{tpu_custom_call.1} parent=11 // pred_fallthru
          _
        // Predicated region
        $region33: #{tpu_custom_call.1} parent=11 // pred_check
          %p251 = pneg %p195
        $region34: #{tpu_custom_call.1} parent=11 // pred_check_branch
          %253 = sbr.rel (%p251) target = $region36
        $region35: #{tpu_custom_call.1} parent=11 // pred_region
          _
        $region36: #{tpu_custom_call.1} parent=11 // pred_fallthru
          _
      $region12: #{tpu_custom_call.1} parent=5 // pred_fallthru
        _
      %p254 = scmp.lt.s32.totalorder %s17, 2
      // Predicated region
      $region37: #{tpu_custom_call.1} parent=5 // pred_check
        %p255 = pneg %p254
      $region38: #{tpu_custom_call.1} parent=5 // pred_check_branch
        %257 = sbr.rel (%p255) target = $region40
      $region39: #{tpu_custom_call.1} parent=5 // pred_region
        // Predicated region
        $region41: #{tpu_custom_call.1} parent=39 // pred_check
          %p258 = pneg %p37
        $region42: #{tpu_custom_call.1} parent=39 // pred_check_branch
          %260 = sbr.rel (%p258) target = $region44
        $region43: #{tpu_custom_call.1} parent=39 // pred_region
          %s261 = sand.u32 %s27, 1
          %s262 = sand.u32 %s27, 1
          %s263 = smul.addr %s262, 24
          %s264 = scalar_lea.vmem [#allocation2], %s263
          %s265 = smul.addr %s17, 8
          %s266 = scalar_lea.vmem %s0, %s265
          // Predicated region
          $region45: #{tpu_custom_call.1} parent=43 // pred_check
            _
          $region46: #{tpu_custom_call.1} parent=43 // pred_check_branch
            %268 = sbr.rel (0) target = $region48
          $region47: #{tpu_custom_call.1} parent=43 // pred_region
            // Predicated region
            $region49: #{tpu_custom_call.1} parent=47 // pred_check
              _
            $region50: #{tpu_custom_call.1} parent=47 // pred_check_branch
              %270 = sbr.rel (0) target = $region52
            $region51: #{tpu_custom_call.1} parent=47 // pred_region
              // Predicated region
              $region64: #{tpu_custom_call.1} parent=51 // pred_check
                _
              $region65: #{tpu_custom_call.1} parent=51 // pred_check_branch
                %290 = sbr.rel (0) target = $region67
              $region66: #{tpu_custom_call.1} parent=51 // pred_region
                loop: start=0, step=1, limit=1
                $region68: #{tpu_custom_call.1} parent=66 // loop_pre_header
                  _
                $region69: #{tpu_custom_call.1} parent=66 // loop_header
                  %s292 = sphi 0, %s296
                  %p293 = scmp.ge.s32.totalorder %s292, 1
                  %s297 = sphi %s266, %s266
                  %s298 = sphi %s264, %s264
                $region70: #{tpu_custom_call.1} parent=66 // loop_header_branch
                  %295 = sbr.rel (%p293) target = $region74
                $region71: #{tpu_custom_call.1} parent=66 // loop_body
                  %v299 = vld [vmem:[%s297] sm:$0xff]
                  %300 = vst [vmem:[%s298] sm:$0xff] %v299
                  %v301 = vld [vmem:[%s297 + $0x10] sm:$0xff]
                  %302 = vst [vmem:[%s298 + $0x8] sm:$0xff] %v301
                  %v303 = vld [vmem:[%s297 + $0x20] sm:$0xff]
                  %304 = vst [vmem:[%s298 + $0x10] sm:$0xff] %v303
                $region72: #{tpu_custom_call.1} parent=66 // loop_footer
                  %s296 = sadd.s32 1, %s292
                $region73: #{tpu_custom_call.1} parent=66 // loop_footer_branch
                  %291 = sbr.rel target = $region69
                $region74: #{tpu_custom_call.1} parent=66 // loop_exit
                  _
              $region67: #{tpu_custom_call.1} parent=51 // pred_fallthru
                _
              // Predicated region
              $region75: #{tpu_custom_call.1} parent=51 // pred_check
                _
              $region76: #{tpu_custom_call.1} parent=51 // pred_check_branch
                %306 = sbr.rel target = $region78
              $region77: #{tpu_custom_call.1} parent=51 // pred_region
                _
              $region78: #{tpu_custom_call.1} parent=51 // pred_fallthru
                _
            $region52: #{tpu_custom_call.1} parent=47 // pred_fallthru
              _
            // Predicated region
            $region53: #{tpu_custom_call.1} parent=47 // pred_check
              _
            $region54: #{tpu_custom_call.1} parent=47 // pred_check_branch
              %272 = sbr.rel target = $region56
            $region55: #{tpu_custom_call.1} parent=47 // pred_region
              %s274 = ssub.s32 256, 1
              loop: start=0, step=1, limit=1
              $region57: #{tpu_custom_call.1} parent=55 // loop_pre_header
                _
              $region58: #{tpu_custom_call.1} parent=55 // loop_header
                %s276 = sphi 0, %s280
                %p277 = scmp.ge.s32.totalorder %s276, 1
                %s281 = sphi %s266, %s266
                %s282 = sphi %s264, %s264
              $region59: #{tpu_custom_call.1} parent=55 // loop_header_branch
                %279 = sbr.rel (%p277) target = $region63
              $region60: #{tpu_custom_call.1} parent=55 // loop_body
                %v283 = vld [vmem:[%s281] sm:%s274]
                %284 = vst [vmem:[%s282] sm:%s274] %v283
                %v285 = vld [vmem:[%s281 + $0x10] sm:%s274]
                %286 = vst [vmem:[%s282 + $0x8] sm:%s274] %v285
                %v287 = vld [vmem:[%s281 + $0x20] sm:%s274]
                %288 = vst [vmem:[%s282 + $0x10] sm:%s274] %v287
              $region61: #{tpu_custom_call.1} parent=55 // loop_footer
                %s280 = sadd.s32 1, %s276
              $region62: #{tpu_custom_call.1} parent=55 // loop_footer_branch
                %275 = sbr.rel target = $region58
              $region63: #{tpu_custom_call.1} parent=55 // loop_exit
                _
            $region56: #{tpu_custom_call.1} parent=47 // pred_fallthru
              _
          $region48: #{tpu_custom_call.1} parent=43 // pred_fallthru
            _
          %307 = vnop
        $region44: #{tpu_custom_call.1} parent=39 // pred_fallthru
          _
        // Predicated region
        $region79: #{tpu_custom_call.1} parent=39 // pred_check
          %p308 = pneg %p63
        $region80: #{tpu_custom_call.1} parent=39 // pred_check_branch
          %310 = sbr.rel (%p308) target = $region82
        $region81: #{tpu_custom_call.1} parent=39 // pred_region
          %s311 = sand.u32 %s53, 1
          %s312 = sand.u32 %s53, 1
          %s313 = smul.addr %s312, 24
          %s314 = scalar_lea.vmem [#allocation3], %s313
          %s315 = smul.addr %s17, 8
          %s316 = scalar_lea.vmem %s1, %s315
          // Predicated region
          $region83: #{tpu_custom_call.1} parent=81 // pred_check
            _
          $region84: #{tpu_custom_call.1} parent=81 // pred_check_branch
            %318 = sbr.rel (0) target = $region86
          $region85: #{tpu_custom_call.1} parent=81 // pred_region
            // Predicated region
            $region87: #{tpu_custom_call.1} parent=85 // pred_check
              _
            $region88: #{tpu_custom_call.1} parent=85 // pred_check_branch
              %320 = sbr.rel (0) target = $region90
            $region89: #{tpu_custom_call.1} parent=85 // pred_region
              // Predicated region
              $region102: #{tpu_custom_call.1} parent=89 // pred_check
                _
              $region103: #{tpu_custom_call.1} parent=89 // pred_check_branch
                %340 = sbr.rel (0) target = $region105
              $region104: #{tpu_custom_call.1} parent=89 // pred_region
                loop: start=0, step=1, limit=1
                $region106: #{tpu_custom_call.1} parent=104 // loop_pre_header
                  _
                $region107: #{tpu_custom_call.1} parent=104 // loop_header
                  %s342 = sphi 0, %s346
                  %p343 = scmp.ge.s32.totalorder %s342, 1
                  %s347 = sphi %s316, %s316
                  %s348 = sphi %s314, %s314
                $region108: #{tpu_custom_call.1} parent=104 // loop_header_branch
                  %345 = sbr.rel (%p343) target = $region112
                $region109: #{tpu_custom_call.1} parent=104 // loop_body
                  %v349 = vld [vmem:[%s347] sm:$0xff]
                  %350 = vst [vmem:[%s348] sm:$0xff] %v349
                  %v351 = vld [vmem:[%s347 + $0x10] sm:$0xff]
                  %352 = vst [vmem:[%s348 + $0x8] sm:$0xff] %v351
                  %v353 = vld [vmem:[%s347 + $0x20] sm:$0xff]
                  %354 = vst [vmem:[%s348 + $0x10] sm:$0xff] %v353
                $region110: #{tpu_custom_call.1} parent=104 // loop_footer
                  %s346 = sadd.s32 1, %s342
                $region111: #{tpu_custom_call.1} parent=104 // loop_footer_branch
                  %341 = sbr.rel target = $region107
                $region112: #{tpu_custom_call.1} parent=104 // loop_exit
                  _
              $region105: #{tpu_custom_call.1} parent=89 // pred_fallthru
                _
              // Predicated region
              $region113: #{tpu_custom_call.1} parent=89 // pred_check
                _
              $region114: #{tpu_custom_call.1} parent=89 // pred_check_branch
                %356 = sbr.rel target = $region116
              $region115: #{tpu_custom_call.1} parent=89 // pred_region
                _
              $region116: #{tpu_custom_call.1} parent=89 // pred_fallthru
                _
            $region90: #{tpu_custom_call.1} parent=85 // pred_fallthru
              _
            // Predicated region
            $region91: #{tpu_custom_call.1} parent=85 // pred_check
              _
            $region92: #{tpu_custom_call.1} parent=85 // pred_check_branch
              %322 = sbr.rel target = $region94
            $region93: #{tpu_custom_call.1} parent=85 // pred_region
              %s324 = ssub.s32 256, 1
              loop: start=0, step=1, limit=1
              $region95: #{tpu_custom_call.1} parent=93 // loop_pre_header
                _
              $region96: #{tpu_custom_call.1} parent=93 // loop_header
                %s326 = sphi 0, %s330
                %p327 = scmp.ge.s32.totalorder %s326, 1
                %s331 = sphi %s316, %s316
                %s332 = sphi %s314, %s314
              $region97: #{tpu_custom_call.1} parent=93 // loop_header_branch
                %329 = sbr.rel (%p327) target = $region101
              $region98: #{tpu_custom_call.1} parent=93 // loop_body
                %v333 = vld [vmem:[%s331] sm:%s324]
                %334 = vst [vmem:[%s332] sm:%s324] %v333
                %v335 = vld [vmem:[%s331 + $0x10] sm:%s324]
                %336 = vst [vmem:[%s332 + $0x8] sm:%s324] %v335
                %v337 = vld [vmem:[%s331 + $0x20] sm:%s324]
                %338 = vst [vmem:[%s332 + $0x10] sm:%s324] %v337
              $region99: #{tpu_custom_call.1} parent=93 // loop_footer
                %s330 = sadd.s32 1, %s326
              $region100: #{tpu_custom_call.1} parent=93 // loop_footer_branch
                %325 = sbr.rel target = $region96
              $region101: #{tpu_custom_call.1} parent=93 // loop_exit
                _
            $region94: #{tpu_custom_call.1} parent=85 // pred_fallthru
              _
          $region86: #{tpu_custom_call.1} parent=81 // pred_fallthru
            _
          %357 = vnop
        $region82: #{tpu_custom_call.1} parent=39 // pred_fallthru
          _
      $region40: #{tpu_custom_call.1} parent=5 // pred_fallthru
        _
      %p358 = scmp.le.s32.totalorder 1, %s17
      %p359 = scmp.lt.s32.totalorder %s17, 3
      %p360 = pnand %p358, %p359
      %p361 = pneg %p360
      // Predicated region
      $region117: #{tpu_custom_call.1} parent=5 // pred_check
        _
      $region118: #{tpu_custom_call.1} parent=5 // pred_check_branch
        %363 = sbr.rel (%p360) target = $region120
      $region119: #{tpu_custom_call.1} parent=5 // pred_region
        %s364 = ssub.s32 %s17, 1
        %s365 = sand.u32 %s30, 1
        %s366 = sand.u32 %s30, 1
        %s367 = smul.addr %s366, 24
        %s368 = scalar_lea.vmem [#allocation2], %s367
        // Predicated region
        $region121: #{tpu_custom_call.1} parent=119 // pred_check
          %p369 = pneg %p43
        $region122: #{tpu_custom_call.1} parent=119 // pred_check_branch
          %371 = sbr.rel (%p369) target = $region124
        $region123: #{tpu_custom_call.1} parent=119 // pred_region
          _
        $region124: #{tpu_custom_call.1} parent=119 // pred_fallthru
          _
        %s372 = sand.u32 %s56, 1
        %s373 = sand.u32 %s56, 1
        %s374 = smul.addr %s373, 24
        %s375 = scalar_lea.vmem [#allocation3], %s374
        // Predicated region
        $region125: #{tpu_custom_call.1} parent=119 // pred_check
          %p376 = pneg %p69
        $region126: #{tpu_custom_call.1} parent=119 // pred_check_branch
          %378 = sbr.rel (%p376) target = $region128
        $region127: #{tpu_custom_call.1} parent=119 // pred_region
          _
        $region128: #{tpu_custom_call.1} parent=119 // pred_fallthru
          _
        %s379 = sand.u32 %s30, 1
        %s380 = sand.u32 %s30, 1
        %s381 = smul.addr %s380, 24
        %s382 = scalar_lea.vmem [#allocation2], %s381
        %p383 = pneg %p43
        %p384 = pneg %p40
        %s385 = sand.u32 %s56, 1
        %s386 = sand.u32 %s56, 1
        %s387 = smul.addr %s386, 24
        %s388 = scalar_lea.vmem [#allocation3], %s387
        %p389 = pneg %p69
        %p390 = pneg %p66
        %p391 = pneg %p90
        %p392 = pneg %p87
        %p393 = pneg %p111
        %p394 = pneg %p108
        %p395 = pneg %p132
        %p396 = pneg %p129
        %p397 = pneg %p153
        %p398 = pneg %p150
        %p399 = pneg %p174
        %p400 = pneg %p171
        %p401 = pneg %p195
        %p402 = pneg %p192
        %p403 = pneg %p221
        %p404 = pneg %p218
        %s405 = sand.u32 %s208, 1
        %s406 = scalar_lea.sflag [#allocation5], %s405
        %s407 = sand.u32 %s208, 1
        %s408 = smul.addr %s407, 8
        %s409 = scalar_lea.vmem [#allocation4], %s408
        %v410 = vld [vmem:[%s368] sm:$0xff]
        %v411 = vld [vmem:[%s2] sm:$0xff]
        %v412 = vld [vmem:[%s2 + $0x8] sm:$0xff]
        %v413 = vld [vmem:[%s2 + $0x10] sm:$0xff]
        %v414 = vld [vmem:[%s2 + $0x18] sm:$0xff]
        %v415 = vld [vmem:[%s2 + $0x20] sm:$0xff]
        %v416 = vld [vmem:[%s2 + $0x28] sm:$0xff]
        %v417 = vld [vmem:[%s2 + $0x30] sm:$0xff]
        %v418 = vld [vmem:[%s2 + $0x38] sm:$0xff]
        %s419 = scalar_lea.vmem %s368, 8 [#allocation2]
        %v420 = vld [vmem:[%s419] sm:$0xff]
        %s421 = scalar_lea.vmem %s2, 64
        %v422 = vld [vmem:[%s421] sm:$0xff]
        %v423 = vld [vmem:[%s421 + $0x8] sm:$0xff]
        %v424 = vld [vmem:[%s421 + $0x10] sm:$0xff]
        %v425 = vld [vmem:[%s421 + $0x18] sm:$0xff]
        %v426 = vld [vmem:[%s421 + $0x20] sm:$0xff]
        %v427 = vld [vmem:[%s421 + $0x28] sm:$0xff]
        %v428 = vld [vmem:[%s421 + $0x30] sm:$0xff]
        %v429 = vld [vmem:[%s421 + $0x38] sm:$0xff]
        %vm430 = vcmask 523264
        %v432 = vsel %vm430, %v420, 0
        %434 = vmatprep.subr.mxu0 0.0
        %435 = vmatpush1.msra.mxu0 0.0
        %436 = vmatprep.subr.mxu0 0.0
        %437 = vmatpush1.msra.mxu0 0.0
        %438 = vmatprep.subr.mxu0 0.0
        %439 = vmatpush1.msra.mxu0 0.0
        %440 = vmatprep.subr.mxu0 0.0
        %441 = vmatpush1.msra.mxu0 0.0
        %442 = vmatprep.subr.mxu0 0.0
        %443 = vmatpush1.msra.mxu0 0.0
        %444 = vmatprep.subr.mxu0 0.0
        %445 = vmatpush1.msra.mxu0 0.0
        %446 = vmatprep.subr.mxu0 0.0
        %447 = vmatpush1.msra.mxu0 0.0
        %448 = vmatprep.subr.mxu0 0.0
        %449 = vmatpush1.msra.mxu0 0.0
        %450 = vmatprep.subr.mxu0 0.0
        %451 = vmatpush1.msra.mxu0 %v429
        %452 = vmatprep.subr.mxu0 0.0
        %453 = vmatpush1.msra.mxu0 %v428
        %454 = vmatprep.subr.mxu0 0.0
        %455 = vmatpush1.msra.mxu0 %v427
        %456 = vmatprep.subr.mxu0 0.0
        %457 = vmatpush1.msra.mxu0 %v426
        %458 = vmatprep.subr.mxu0 0.0
        %459 = vmatpush1.msra.mxu0 %v425
        %460 = vmatprep.subr.mxu0 0.0
        %461 = vmatpush1.msra.mxu0 %v424
        %462 = vmatprep.subr.mxu0 0.0
        %463 = vmatpush1.msra.mxu0 %v423
        %464 = vmatprep.subr.mxu0 0.0
        %465 = vmatpush1.msra.mxu0 %v422
        %466 = vmatprep.subr.mxu0 0.0
        %467 = vmatpush2.msra.mxu0 0.0
        %468 = vmatprep.subr.mxu0 0.0
        %469 = vmatpush2.msra.mxu0 0.0
        %470 = vmatprep.subr.mxu0 0.0
        %471 = vmatpush2.msra.mxu0 0.0
        %472 = vmatprep.subr.mxu0 0.0
        %473 = vmatpush2.msra.mxu0 0.0
        %474 = vmatprep.subr.mxu0 0.0
        %475 = vmatpush2.msra.mxu0 0.0
        %476 = vmatprep.subr.mxu0 0.0
        %477 = vmatpush2.msra.mxu0 0.0
        %478 = vmatprep.subr.mxu0 0.0
        %479 = vmatpush2.msra.mxu0 0.0
        %480 = vmatprep.subr.mxu0 0.0
        %481 = vmatpush2.msra.mxu0 0.0
        %482 = vmatprep.subr.mxu0 0.0
        %483 = vmatpush2.msra.mxu0 0.0
        %484 = vmatprep.subr.mxu0 0.0
        %485 = vmatpush2.msra.mxu0 0.0
        %486 = vmatprep.subr.mxu0 0.0
        %487 = vmatpush2.msra.mxu0 0.0
        %488 = vmatprep.subr.mxu0 0.0
        %489 = vmatpush2.msra.mxu0 0.0
        %490 = vmatprep.subr.mxu0 0.0
        %491 = vmatpush2.msra.mxu0 0.0
        %492 = vmatprep.subr.mxu0 0.0
        %493 = vmatpush2.msra.mxu0 0.0
        %494 = vmatprep.subr.mxu0 0.0
        %495 = vmatpush2.msra.mxu0 0.0
        %496 = vmatprep.subr.mxu0 0.0
        %497 = vmatpush2.msra.mxu0 0.0
        %498 = vmatprep.mubr.f32.mxu0 0.0
        %499 = vmatmul.mubr.f32.gmra.mxu0 %v432
        %v500 = vpop.f32.mrf.mxu0
        %v501 = vadd.f32 0.0, %v500
        %v502 = vpop.f32.mrf.mxu0
        %503 = vdwg.mxu0
        %v505 = vsel %vm430, %v410, 0
        %507 = vmatprep.subr.mxu0 0.0
        %508 = vmatpush1.msra.mxu0 0.0
        %509 = vmatprep.subr.mxu0 0.0
        %510 = vmatpush1.msra.mxu0 0.0
        %511 = vmatprep.subr.mxu0 0.0
        %512 = vmatpush1.msra.mxu0 0.0
        %513 = vmatprep.subr.mxu0 0.0
        %514 = vmatpush1.msra.mxu0 0.0
        %515 = vmatprep.subr.mxu0 0.0
        %516 = vmatpush1.msra.mxu0 0.0
        %517 = vmatprep.subr.mxu0 0.0
        %518 = vmatpush1.msra.mxu0 0.0
        %519 = vmatprep.subr.mxu0 0.0
        %520 = vmatpush1.msra.mxu0 0.0
        %521 = vmatprep.subr.mxu0 0.0
        %522 = vmatpush1.msra.mxu0 0.0
        %523 = vmatprep.subr.mxu0 0.0
        %524 = vmatpush1.msra.mxu0 %v418
        %525 = vmatprep.subr.mxu0 0.0
        %526 = vmatpush1.msra.mxu0 %v417
        %527 = vmatprep.subr.mxu0 0.0
        %528 = vmatpush1.msra.mxu0 %v416
        %529 = vmatprep.subr.mxu0 0.0
        %530 = vmatpush1.msra.mxu0 %v415
        %531 = vmatprep.subr.mxu0 0.0
        %532 = vmatpush1.msra.mxu0 %v414
        %533 = vmatprep.subr.mxu0 0.0
        %534 = vmatpush1.msra.mxu0 %v413
        %535 = vmatprep.subr.mxu0 0.0
        %536 = vmatpush1.msra.mxu0 %v412
        %537 = vmatprep.subr.mxu0 0.0
        %538 = vmatpush1.msra.mxu0 %v411
        %539 = vmatprep.subr.mxu0 0.0
        %540 = vmatpush2.msra.mxu0 0.0
        %541 = vmatprep.subr.mxu0 0.0
        %542 = vmatpush2.msra.mxu0 0.0
        %543 = vmatprep.subr.mxu0 0.0
        %544 = vmatpush2.msra.mxu0 0.0
        %545 = vmatprep.subr.mxu0 0.0
        %546 = vmatpush2.msra.mxu0 0.0
        %547 = vmatprep.subr.mxu0 0.0
        %548 = vmatpush2.msra.mxu0 0.0
        %549 = vmatprep.subr.mxu0 0.0
        %550 = vmatpush2.msra.mxu0 0.0
        %551 = vmatprep.subr.mxu0 0.0
        %552 = vmatpush2.msra.mxu0 0.0
        %553 = vmatprep.subr.mxu0 0.0
        %554 = vmatpush2.msra.mxu0 0.0
        %555 = vmatprep.subr.mxu0 0.0
        %556 = vmatpush2.msra.mxu0 0.0
        %557 = vmatprep.subr.mxu0 0.0
        %558 = vmatpush2.msra.mxu0 0.0
        %559 = vmatprep.subr.mxu0 0.0
        %560 = vmatpush2.msra.mxu0 0.0
        %561 = vmatprep.subr.mxu0 0.0
        %562 = vmatpush2.msra.mxu0 0.0
        %563 = vmatprep.subr.mxu0 0.0
        %564 = vmatpush2.msra.mxu0 0.0
        %565 = vmatprep.subr.mxu0 0.0
        %566 = vmatpush2.msra.mxu0 0.0
        %567 = vmatprep.subr.mxu0 0.0
        %568 = vmatpush2.msra.mxu0 0.0
        %569 = vmatprep.subr.mxu0 0.0
        %570 = vmatpush2.msra.mxu0 0.0
        %571 = vmatprep.mubr.f32.mxu0 0.0
        %572 = vmatmul.mubr.f32.gmra.mxu0 %v505
        %v573 = vpop.f32.mrf.mxu0
        %v574 = vadd.f32 %v501, %v573
        %v575 = vpop.f32.mrf.mxu0
        %576 = vdwg.mxu0
        %s577 = scalar_lea.vmem %s368, 16 [#allocation2]
        %v578 = vld [vmem:[%s577] sm:$0xff]
        %s579 = scalar_lea.vmem %s2, 128
        %v580 = vld [vmem:[%s579] sm:$0xff]
        %v581 = vld [vmem:[%s579 + $0x8] sm:$0xff]
        %v582 = vld [vmem:[%s579 + $0x10] sm:$0xff]
        %v583 = vld [vmem:[%s579 + $0x18] sm:$0xff]
        %v584 = vld [vmem:[%s579 + $0x20] sm:$0xff]
        %v585 = vld [vmem:[%s579 + $0x28] sm:$0xff]
        %v586 = vld [vmem:[%s579 + $0x30] sm:$0xff]
        %v587 = vld [vmem:[%s579 + $0x38] sm:$0xff]
        %v589 = vsel %vm430, %v578, 0
        %591 = vmatprep.subr.mxu0 0.0
        %592 = vmatpush1.msra.mxu0 0.0
        %593 = vmatprep.subr.mxu0 0.0
        %594 = vmatpush1.msra.mxu0 0.0
        %595 = vmatprep.subr.mxu0 0.0
        %596 = vmatpush1.msra.mxu0 0.0
        %597 = vmatprep.subr.mxu0 0.0
        %598 = vmatpush1.msra.mxu0 0.0
        %599 = vmatprep.subr.mxu0 0.0
        %600 = vmatpush1.msra.mxu0 0.0
        %601 = vmatprep.subr.mxu0 0.0
        %602 = vmatpush1.msra.mxu0 0.0
        %603 = vmatprep.subr.mxu0 0.0
        %604 = vmatpush1.msra.mxu0 0.0
        %605 = vmatprep.subr.mxu0 0.0
        %606 = vmatpush1.msra.mxu0 0.0
        %607 = vmatprep.subr.mxu0 0.0
        %608 = vmatpush1.msra.mxu0 %v587
        %609 = vmatprep.subr.mxu0 0.0
        %610 = vmatpush1.msra.mxu0 %v586
        %611 = vmatprep.subr.mxu0 0.0
        %612 = vmatpush1.msra.mxu0 %v585
        %613 = vmatprep.subr.mxu0 0.0
        %614 = vmatpush1.msra.mxu0 %v584
        %615 = vmatprep.subr.mxu0 0.0
        %616 = vmatpush1.msra.mxu0 %v583
        %617 = vmatprep.subr.mxu0 0.0
        %618 = vmatpush1.msra.mxu0 %v582
        %619 = vmatprep.subr.mxu0 0.0
        %620 = vmatpush1.msra.mxu0 %v581
        %621 = vmatprep.subr.mxu0 0.0
        %622 = vmatpush1.msra.mxu0 %v580
        %623 = vmatprep.subr.mxu0 0.0
        %624 = vmatpush2.msra.mxu0 0.0
        %625 = vmatprep.subr.mxu0 0.0
        %626 = vmatpush2.msra.mxu0 0.0
        %627 = vmatprep.subr.mxu0 0.0
        %628 = vmatpush2.msra.mxu0 0.0
        %629 = vmatprep.subr.mxu0 0.0
        %630 = vmatpush2.msra.mxu0 0.0
        %631 = vmatprep.subr.mxu0 0.0
        %632 = vmatpush2.msra.mxu0 0.0
        %633 = vmatprep.subr.mxu0 0.0
        %634 = vmatpush2.msra.mxu0 0.0
        %635 = vmatprep.subr.mxu0 0.0
        %636 = vmatpush2.msra.mxu0 0.0
        %637 = vmatprep.subr.mxu0 0.0
        %638 = vmatpush2.msra.mxu0 0.0
        %639 = vmatprep.subr.mxu0 0.0
        %640 = vmatpush2.msra.mxu0 0.0
        %641 = vmatprep.subr.mxu0 0.0
        %642 = vmatpush2.msra.mxu0 0.0
        %643 = vmatprep.subr.mxu0 0.0
        %644 = vmatpush2.msra.mxu0 0.0
        %645 = vmatprep.subr.mxu0 0.0
        %646 = vmatpush2.msra.mxu0 0.0
        %647 = vmatprep.subr.mxu0 0.0
        %648 = vmatpush2.msra.mxu0 0.0
        %649 = vmatprep.subr.mxu0 0.0
        %650 = vmatpush2.msra.mxu0 0.0
        %651 = vmatprep.subr.mxu0 0.0
        %652 = vmatpush2.msra.mxu0 0.0
        %653 = vmatprep.subr.mxu0 0.0
        %654 = vmatpush2.msra.mxu0 0.0
        %655 = vmatprep.mubr.f32.mxu0 0.0
        %656 = vmatmul.mubr.f32.gmra.mxu0 %v589
        %v657 = vpop.f32.mrf.mxu0
        %v658 = vadd.f32 0.0, %v657
        %v659 = vpop.f32.mrf.mxu0
        %660 = vdwg.mxu0
        %v661 = vadd.f32 %v574, %v658
        %v662 = vld [vmem:[%s3] sm:$0x1]
        %v664 = vlaneseq
        %v665 = vshrl.u32 %v664, 7
        %v666 = vsub.s32 0, %v665
        %v667 = vrot.slane %v662, %v666
        %v669 = vadd.f32 %v661, %v667
        %v670 = vmax.f32 %v669, 0.0
        %v671 = vld [vmem:[%s4] sm:$0xff]
        %v672 = vld [vmem:[%s4 + $0x8] sm:$0xff]
        %v673 = vld [vmem:[%s4 + $0x10] sm:$0xff]
        %v674 = vld [vmem:[%s4 + $0x18] sm:$0xff]
        %v675 = vld [vmem:[%s4 + $0x20] sm:$0xff]
        %v676 = vld [vmem:[%s4 + $0x28] sm:$0xff]
        %v677 = vld [vmem:[%s5] sm:$0x1]
        %v679 = vlaneseq
        %v680 = vshrl.u32 %v679, 7
        %v681 = vsub.s32 0, %v680
        %v682 = vrot.slane %v677, %v681
        %vm684 = vcmask 392192
        %v686 = vsel %vm684, %v670, 0
        %688 = vmatprep.subr.mxu0 0.0
        %689 = vmatpush1.msra.mxu0 0.0
        %690 = vmatprep.subr.mxu0 0.0
        %691 = vmatpush1.msra.mxu0 0.0
        %692 = vmatprep.subr.mxu0 0.0
        %693 = vmatpush1.msra.mxu0 0.0
        %694 = vmatprep.subr.mxu0 0.0
        %695 = vmatpush1.msra.mxu0 0.0
        %696 = vmatprep.subr.mxu0 0.0
        %697 = vmatpush1.msra.mxu0 0.0
        %698 = vmatprep.subr.mxu0 0.0
        %699 = vmatpush1.msra.mxu0 0.0
        %700 = vmatprep.subr.mxu0 0.0
        %701 = vmatpush1.msra.mxu0 0.0
        %702 = vmatprep.subr.mxu0 0.0
        %703 = vmatpush1.msra.mxu0 0.0
        %704 = vmatprep.subr.mxu0 0.0
        %705 = vmatpush1.msra.mxu0 0.0
        %706 = vmatprep.subr.mxu0 0.0
        %707 = vmatpush1.msra.mxu0 0.0
        %708 = vmatprep.subr.mxu0 0.0
        %709 = vmatpush1.msra.mxu0 %v676
        %710 = vmatprep.subr.mxu0 0.0
        %711 = vmatpush1.msra.mxu0 %v675
        %712 = vmatprep.subr.mxu0 0.0
        %713 = vmatpush1.msra.mxu0 %v674
        %714 = vmatprep.subr.mxu0 0.0
        %715 = vmatpush1.msra.mxu0 %v673
        %716 = vmatprep.subr.mxu0 0.0
        %717 = vmatpush1.msra.mxu0 %v672
        %718 = vmatprep.subr.mxu0 0.0
        %719 = vmatpush1.msra.mxu0 %v671
        %720 = vmatprep.subr.mxu0 0.0
        %721 = vmatpush2.msra.mxu0 0.0
        %722 = vmatprep.subr.mxu0 0.0
        %723 = vmatpush2.msra.mxu0 0.0
        %724 = vmatprep.subr.mxu0 0.0
        %725 = vmatpush2.msra.mxu0 0.0
        %726 = vmatprep.subr.mxu0 0.0
        %727 = vmatpush2.msra.mxu0 0.0
        %728 = vmatprep.subr.mxu0 0.0
        %729 = vmatpush2.msra.mxu0 0.0
        %730 = vmatprep.subr.mxu0 0.0
        %731 = vmatpush2.msra.mxu0 0.0
        %732 = vmatprep.subr.mxu0 0.0
        %733 = vmatpush2.msra.mxu0 0.0
        %734 = vmatprep.subr.mxu0 0.0
        %735 = vmatpush2.msra.mxu0 0.0
        %736 = vmatprep.subr.mxu0 0.0
        %737 = vmatpush2.msra.mxu0 0.0
        %738 = vmatprep.subr.mxu0 0.0
        %739 = vmatpush2.msra.mxu0 0.0
        %740 = vmatprep.subr.mxu0 0.0
        %741 = vmatpush2.msra.mxu0 0.0
        %742 = vmatprep.subr.mxu0 0.0
        %743 = vmatpush2.msra.mxu0 0.0
        %744 = vmatprep.subr.mxu0 0.0
        %745 = vmatpush2.msra.mxu0 0.0
        %746 = vmatprep.subr.mxu0 0.0
        %747 = vmatpush2.msra.mxu0 0.0
        %748 = vmatprep.subr.mxu0 0.0
        %749 = vmatpush2.msra.mxu0 0.0
        %750 = vmatprep.subr.mxu0 0.0
        %751 = vmatpush2.msra.mxu0 0.0
        %752 = vmatprep.mubr.f32.mxu0 0.0
        %753 = vmatmul.mubr.f32.gmra.mxu0 %v686
        %v754 = vpop.f32.mrf.mxu0
        %v755 = vadd.f32 %v682, %v754
        %v756 = vpop.f32.mrf.mxu0
        %757 = vdwg.mxu0
        %v758 = vmax.f32 %v755, 0.0
        %v759 = vld [vmem:[%s6] sm:$0xff]
        %v760 = vld [vmem:[%s6 + $0x8] sm:$0xff]
        %v761 = vld [vmem:[%s6 + $0x10] sm:$0xff]
        %v762 = vld [vmem:[%s7] sm:$0x1]
        %v764 = vlaneseq
        %v765 = vshrl.u32 %v764, 7
        %v766 = vsub.s32 0, %v765
        %v767 = vrot.slane %v762, %v766
        %vm769 = vcmask 195584
        %v771 = vsel %vm769, %v758, 0
        %773 = vmatprep.subr.mxu0 0.0
        %774 = vmatpush1.msra.mxu0 0.0
        %775 = vmatprep.subr.mxu0 0.0
        %776 = vmatpush1.msra.mxu0 0.0
        %777 = vmatprep.subr.mxu0 0.0
        %778 = vmatpush1.msra.mxu0 0.0
        %779 = vmatprep.subr.mxu0 0.0
        %780 = vmatpush1.msra.mxu0 0.0
        %781 = vmatprep.subr.mxu0 0.0
        %782 = vmatpush1.msra.mxu0 0.0
        %783 = vmatprep.subr.mxu0 0.0
        %784 = vmatpush1.msra.mxu0 0.0
        %785 = vmatprep.subr.mxu0 0.0
        %786 = vmatpush1.msra.mxu0 0.0
        %787 = vmatprep.subr.mxu0 0.0
        %788 = vmatpush1.msra.mxu0 0.0
        %789 = vmatprep.subr.mxu0 0.0
        %790 = vmatpush1.msra.mxu0 0.0
        %791 = vmatprep.subr.mxu0 0.0
        %792 = vmatpush1.msra.mxu0 0.0
        %793 = vmatprep.subr.mxu0 0.0
        %794 = vmatpush1.msra.mxu0 0.0
        %795 = vmatprep.subr.mxu0 0.0
        %796 = vmatpush1.msra.mxu0 0.0
        %797 = vmatprep.subr.mxu0 0.0
        %798 = vmatpush1.msra.mxu0 0.0
        %799 = vmatprep.subr.mxu0 0.0
        %800 = vmatpush1.msra.mxu0 %v761
        %801 = vmatprep.subr.mxu0 0.0
        %802 = vmatpush1.msra.mxu0 %v760
        %803 = vmatprep.subr.mxu0 0.0
        %804 = vmatpush1.msra.mxu0 %v759
        %805 = vmatprep.subr.mxu0 0.0
        %806 = vmatpush2.msra.mxu0 0.0
        %807 = vmatprep.subr.mxu0 0.0
        %808 = vmatpush2.msra.mxu0 0.0
        %809 = vmatprep.subr.mxu0 0.0
        %810 = vmatpush2.msra.mxu0 0.0
        %811 = vmatprep.subr.mxu0 0.0
        %812 = vmatpush2.msra.mxu0 0.0
        %813 = vmatprep.subr.mxu0 0.0
        %814 = vmatpush2.msra.mxu0 0.0
        %815 = vmatprep.subr.mxu0 0.0
        %816 = vmatpush2.msra.mxu0 0.0
        %817 = vmatprep.subr.mxu0 0.0
        %818 = vmatpush2.msra.mxu0 0.0
        %819 = vmatprep.subr.mxu0 0.0
        %820 = vmatpush2.msra.mxu0 0.0
        %821 = vmatprep.subr.mxu0 0.0
        %822 = vmatpush2.msra.mxu0 0.0
        %823 = vmatprep.subr.mxu0 0.0
        %824 = vmatpush2.msra.mxu0 0.0
        %825 = vmatprep.subr.mxu0 0.0
        %826 = vmatpush2.msra.mxu0 0.0
        %827 = vmatprep.subr.mxu0 0.0
        %828 = vmatpush2.msra.mxu0 0.0
        %829 = vmatprep.subr.mxu0 0.0
        %830 = vmatpush2.msra.mxu0 0.0
        %831 = vmatprep.subr.mxu0 0.0
        %832 = vmatpush2.msra.mxu0 0.0
        %833 = vmatprep.subr.mxu0 0.0
        %834 = vmatpush2.msra.mxu0 0.0
        %835 = vmatprep.subr.mxu0 0.0
        %836 = vmatpush2.msra.mxu0 0.0
        %837 = vmatprep.mubr.f32.mxu0 0.0
        %838 = vmatmul.mubr.f32.gmra.mxu0 %v771
        %v839 = vpop.f32.mrf.mxu0
        %v840 = vadd.f32 %v767, %v839
        %v841 = vpop.f32.mrf.mxu0
        %842 = vdwg.mxu0
        %vm843 = vcmask 23552
        %v844 = vsel %vm843, %v840, -inf
        %845 = vmax.xlane.f32.xlu0 %v844
        %v846 = vpop.xlane.xlu0 %845
        %v847 = vsub.f32 %v840, %v846
        %v848 = vmul.f32 %v847, 1.442695
        %v849 = vpow.pop %v848
        %v850 = vsel %vm843, %v849, 0.0
        %851 = vadd.xlane.f32.xlu0 %v850
        %v852 = vpop.xlane.xlu0 %851
        %v853 = vrcp.pop %v852
        %v854 = vmul.f32 %v849, %v853
        %v855 = vld [vmem:[%s375] sm:$0xff]
        %857 = vset.pattern.permute.xlu0 0
        %858 = vperm.xlu0 %857, %v854
        %v859 = vpop.permute.xlu0 %858
        %v861 = vmul.f32 %v855, %v859
        %s862 = scalar_lea.vmem %s375, 8 [#allocation3]
        %v863 = vld [vmem:[%s862] sm:$0xff]
        %864 = vset.pattern.permute.xlu0 1
        %865 = vperm.xlu0 %864, %v854
        %v866 = vpop.permute.xlu0 %865
        %v868 = vmul.f32 %v863, %v866
        %v869 = vadd.f32 %v861, %v868
        %s870 = scalar_lea.vmem %s375, 16 [#allocation3]
        %v871 = vld [vmem:[%s870] sm:$0xff]
        %872 = vset.pattern.permute.xlu0 2
        %873 = vperm.xlu0 %872, %v854
        %v874 = vpop.permute.xlu0 %873
        %v876 = vmul.f32 %v871, %v874
        %v877 = vadd.f32 %v869, %v876
        %878 = vst [vmem:[%s409] sm:$0xff] %v877
        %s879 = sand.u32 %s208, 1
        %s880 = scalar_lea.sflag [#allocation5], %s879
        %s881 = sand.u32 %s208, 1
        %s882 = smul.addr %s881, 8
        %s883 = scalar_lea.vmem [#allocation4], %s882
        // Predicated region
        $region129: #{tpu_custom_call.1} parent=119 // pred_check
          %p884 = pneg %p218
        $region130: #{tpu_custom_call.1} parent=119 // pred_check_branch
          %886 = sbr.rel (%p884) target = $region132
        $region131: #{tpu_custom_call.1} parent=119 // pred_region
          %s888 = ssub.s32 128, 128
          %889 = vsyncadd %s880, %s888
          %s890 = smul.addr %s22, 128
          %s891 = scalar_lea.hbm %s8, %s890
          %s893 = sshll.u32 %s883, 4
          %s894 = int_to_ptr.vmem [resolvable:$true] %s893
          %896 = dma.vmem_to_hbm [thread:$0]  %s894, 128, %s891, %s880
        $region132: #{tpu_custom_call.1} parent=119 // pred_fallthru
          _
      $region120: #{tpu_custom_call.1} parent=5 // pred_fallthru
        _
      %p897 = scmp.le.s32.totalorder 2, %s17
      // Predicated region
      $region133: #{tpu_custom_call.1} parent=5 // pred_check
        %p898 = pneg %p897
      $region134: #{tpu_custom_call.1} parent=5 // pred_check_branch
        %900 = sbr.rel (%p898) target = $region136
      $region135: #{tpu_custom_call.1} parent=5 // pred_region
        %s901 = ssub.s32 %s17, 2
        // Predicated region
        $region137: #{tpu_custom_call.1} parent=135 // pred_check
          %p902 = pneg %p224
        $region138: #{tpu_custom_call.1} parent=135 // pred_check_branch
          %904 = sbr.rel (%p902) target = $region140
        $region139: #{tpu_custom_call.1} parent=135 // pred_region
          %s905 = sand.u32 %s209, 1
          %s906 = scalar_lea.sflag [#allocation5], %s905
          %s907 = sand.u32 %s209, 1
          %s908 = smul.addr %s907, 8
          %s909 = scalar_lea.vmem [#allocation4], %s908
          %910 = dma.done %s906, 128
        $region140: #{tpu_custom_call.1} parent=135 // pred_fallthru
          _
      $region136: #{tpu_custom_call.1} parent=5 // pred_fallthru
        _
    $region6: #{tpu_custom_call.1} parent=1 // loop_footer
      %s21 = sadd.s32 1, %s17
    $region7: #{tpu_custom_call.1} parent=1 // loop_footer_branch
      %16 = sbr.rel target = $region3
    $region8: #{tpu_custom_call.1} parent=1 // loop_exit
      _
    %911 = vsyncpa [#allocation5], 1
    %s912 = scalar_lea.sflag [#allocation5], 1
    %913 = vsyncpa %s912, 1

</llo_original>
